<compile_context>
chip_gen: v6e
topology: v6e:2x2x1
jax: 0.10.0
libtpu: 0.0.40
codegen_flags: <defaults>
</compile_context>

<pallas_src>
import functools

import jax
import jax.numpy as jnp
from jax import lax
from jax.experimental import pallas as pl
from jax.experimental.pallas import tpu as pltpu

_LANE = 128
_MiB = 1024 * 1024
_ONE_SIXTH = 1.0 / 6.0


def _vmem_capacity_bytes():
    try:
        return int(pltpu.get_tpu_info().vmem_capacity_bytes)
    except Exception:
        return 64 * _MiB          # conservative (v7x-sized) fallback


def _lane_tile(hw, rows, bytes_per_elem, target_bytes):
    """Last-dim tile: a multiple of 128 targeting ~target_bytes per block, or
    the full extent when HW is small (full extent is exempt from the 128 rule)."""
    if hw <= _LANE:
        return int(hw)
    t = (target_bytes // max(1, rows * bytes_per_elem)) // _LANE * _LANE
    t = max(_LANE, int(t))
    return int(hw) if t >= hw else t


# -----------------------------------------------------------------------------
# Single-pass kernel: Nb samples per grid step; x is read once, written once.
# -----------------------------------------------------------------------------
def _se_single_pass_kernel(x_ref, w1t_ref, bns_ref, bnb_ref, w2t_ref, o_ref,
                           *, inv_hw):
    # x_ref: (Nb, C, HW) in the input dtype (f32 or bf16).  Pool in f32.
    # The lane reduction lowers to cross-vreg VPU adds plus a small intra-vreg
    # XLU tail per 8 rows, so it does not bind the XLU slot here.
    pooled = jnp.sum(x_ref[...].astype(jnp.float32), axis=-1) * inv_hw  # (Nb, C)
    h = jnp.dot(pooled, w1t_ref[...],
                preferred_element_type=jnp.float32)                     # (Nb, mid)
    h = jnp.maximum(h * bns_ref[...] + bnb_ref[...], 0.0)               # BN + ReLU
    atten = jnp.dot(h, w2t_ref[...],
                    preferred_element_type=jnp.float32)                 # (Nb, C)
    atten = jnp.clip(atten + 3.0, 0.0, 6.0) * _ONE_SIXTH                # hard-sigmoid
    # Re-read x_ref for the scale step so the f32 copy is not held live
    # across the pool -> MLP sequence.
    o_ref[...] = (x_ref[...].astype(jnp.float32)
                  * atten[:, :, None]).astype(o_ref.dtype)


def _se_single_pass(x_flat, w1t, bn_scale, bn_bias, w2t, *, inv_hw, nb,
                    vmem_limit, donate_x):
    N, C, HW = x_flat.shape
    mid = w1t.shape[1]
    grid_n = pl.cdiv(N, nb)
    itemsize = x_flat.dtype.itemsize
    kernel = functools.partial(_se_single_pass_kernel, inv_hw=inv_hw)
    cost = pl.CostEstimate(
        flops=int(4 * N * C * mid + 2 * N * C * HW),
        transcendentals=0,
        bytes_accessed=int(2 * N * C * HW * itemsize),
    )
    return pl.pallas_call(
        kernel,
        out_shape=jax.ShapeDtypeStruct((N, C, HW), x_flat.dtype),
        grid_spec=pltpu.PrefetchScalarGridSpec(
            num_scalar_prefetch=0,
            grid=(grid_n,),
            in_specs=[
                pl.BlockSpec((nb, C, HW), lambda i: (i, 0, 0)),   # x slab(s)
                pl.BlockSpec((C, mid), lambda i: (0, 0)),         # W1^T
                pl.BlockSpec((1, mid), lambda i: (0, 0)),         # BN scale
                pl.BlockSpec((1, mid), lambda i: (0, 0)),         # BN bias
                pl.BlockSpec((mid, C), lambda i: (0, 0)),         # W2^T
            ],
            out_specs=pl.BlockSpec((nb, C, HW), lambda i: (i, 0, 0)),
        ),
        compiler_params=pltpu.CompilerParams(
            dimension_semantics=("parallel",),
            vmem_limit_bytes=int(vmem_limit),
        ),
        cost_estimate=cost,
        input_output_aliases=({0: 0} if donate_x else {}),
    )(x_flat, w1t, bn_scale, bn_bias, w2t)


# -----------------------------------------------------------------------------
# Two-pass kernels (large C*HW slabs): pool + fused excite MLP, then scale.
# -----------------------------------------------------------------------------
def _pool_mlp_kernel(x_ref, w1_ref, bns_ref, bnb_ref, w2_ref, atten_ref,
                     acc_ref, *, inv_hw, hw, tile_hw, need_mask):
    t = pl.program_id(1)

    @pl.when(t == 0)
    def _():
        acc_ref[...] = jnp.zeros_like(acc_ref)

    xf = x_ref[0].astype(jnp.float32)                       # (C, tile_hw)
    if need_mask:
        lane = lax.broadcasted_iota(jnp.int32, xf.shape, 1)
        xf = jnp.where(t * tile_hw + lane < hw, xf, 0.0)    # ragged last tile
    # Lane reduction as an MXU ones-vector matvec so the pool pass stays
    # HBM-bound and off the XLU slot (v6e/v7x have only 2 XLUs).
    ones_v = jnp.ones((tile_hw, 1), jnp.float32)
    acc_ref[...] += jnp.dot(xf, ones_v, preferred_element_type=jnp.float32)

    @pl.when(t == pl.num_programs(1) - 1)
    def _():
        # Excite MLP fused into the finalize step, in column orientation
        # (C,1) -> (mid,1) -> (C,1): the result lands directly in the (N,C,1)
        # layout the scale pass broadcasts over lanes -- no transposes and no
        # intermediate XLA ops / HBM round-trips between the two passes.
        pooled = acc_ref[...] * inv_hw                       # (C, 1)
        h = jnp.dot(w1_ref[...], pooled,
                    preferred_element_type=jnp.float32)      # (mid, 1)
        h = jnp.maximum(h * bns_ref[...] + bnb_ref[...], 0.0)
        a = jnp.dot(w2_ref[...], h,
                    preferred_element_type=jnp.float32)      # (C, 1)
        atten_ref[...] = (jnp.clip(a + 3.0, 0.0, 6.0) * _ONE_SIXTH)[None]


def _scale_kernel(x_ref, a_ref, o_ref):
    # x_ref: (1, C, tile_hw); a_ref: (1, C, 1) broadcast over lanes.
    o_ref[...] = (x_ref[...].astype(jnp.float32) * a_ref[...]).astype(o_ref.dtype)


def _se_two_pass(x_flat, w1, bn_scale_col, bn_bias_col, w2, *, inv_hw,
                 vmem_limit, tile_hw_override=None, donate_x=False):
    N, C, HW = x_flat.shape
    mid = w1.shape[0]
    itemsize = x_flat.dtype.itemsize

    # ---- pass 1: global average pool + fused excite MLP ---------------------
    tile_hw = int(tile_hw_override or _lane_tile(HW, C, itemsize, 2 * _MiB))
    n_hw = pl.cdiv(HW, tile_hw)
    need_mask = (HW % tile_hw) != 0
    pool_kernel = functools.partial(_pool_mlp_kernel, inv_hw=inv_hw, hw=HW,
                                    tile_hw=tile_hw, need_mask=need_mask)
    atten = pl.pallas_call(
        pool_kernel,
        out_shape=jax.ShapeDtypeStruct((N, C, 1), jnp.float32),
        grid_spec=pltpu.PrefetchScalarGridSpec(
            num_scalar_prefetch=0,
            grid=(N, n_hw),
            in_specs=[
                pl.BlockSpec((1, C, tile_hw), lambda n, t: (n, 0, t)),  # x
                pl.BlockSpec((mid, C), lambda n, t: (0, 0)),            # W1
                pl.BlockSpec((mid, 1), lambda n, t: (0, 0)),            # BN scale
                pl.BlockSpec((mid, 1), lambda n, t: (0, 0)),            # BN bias
                pl.BlockSpec((C, mid), lambda n, t: (0, 0)),            # W2
            ],
            out_specs=pl.BlockSpec((1, C, 1), lambda n, t: (n, 0, 0)),
            scratch_shapes=[pltpu.VMEM((C, 1), jnp.float32)],
        ),
        compiler_params=pltpu.CompilerParams(
            dimension_semantics=("parallel", "arbitrary"),
            vmem_limit_bytes=int(vmem_limit),
        ),
        cost_estimate=pl.CostEstimate(
            flops=int(2 * N * C * HW + 4 * N * C * mid),
            transcendentals=0,
            bytes_accessed=int(N * C * HW * itemsize)),
    )(x_flat, w1, bn_scale_col, bn_bias_col, w2)

    # ---- pass 2: lane-dense elementwise scale, fully parallel grid ----------
    tile_hw2 = _lane_tile(HW, C, itemsize, 4 * _MiB)
    n_hw2 = pl.cdiv(HW, tile_hw2)
    return pl.pallas_call(
        _scale_kernel,
        out_shape=jax.ShapeDtypeStruct((N, C, HW), x_flat.dtype),
        grid_spec=pltpu.PrefetchScalarGridSpec(
            num_scalar_prefetch=0,
            grid=(N, n_hw2),
            in_specs=[
                pl.BlockSpec((1, C, tile_hw2), lambda n, t: (n, 0, t)),
                pl.BlockSpec((1, C, 1), lambda n, t: (n, 0, 0)),
            ],
            out_specs=pl.BlockSpec((1, C, tile_hw2), lambda n, t: (n, 0, t)),
        ),
        compiler_params=pltpu.CompilerParams(
            dimension_semantics=("parallel", "parallel"),
            vmem_limit_bytes=int(vmem_limit),
        ),
        cost_estimate=pl.CostEstimate(
            flops=int(N * C * HW), transcendentals=0,
            bytes_accessed=int(2 * N * C * HW * itemsize)),
        input_output_aliases=({0: 0} if donate_x else {}),
    )(x_flat, atten)


def se_layer(x, w1, bn_gamma, bn_beta, bn_mean, bn_var, w2, eps=1e-5,
             force_two_pass=False, donate_x=False, _two_pass_tile_hw=None):
    """SELayer forward (inference-mode BN).  x: (N, C, H, W), f32 or bf16."""
    N, C, H, W = x.shape
    mid = w1.shape[0]
    HW = H * W
    inv_hw = 1.0 / HW

    # NCHW -> (N, C, HW): spatial axis on the 128 lanes.  No padding and no
    # dtype conversion here -- both would add whole-tensor HBM passes.
    x_flat = x.reshape(N, C, HW)
    in_b = x_flat.dtype.itemsize

    # Fold BN running stats (inference form) into scale/bias; prepare both
    # weight orientations (tiny) so neither kernel transposes in-kernel.
    inv_std = 1.0 / jnp.sqrt(bn_var.astype(jnp.float32) + eps)
    bn_scale = bn_gamma.astype(jnp.float32) * inv_std
    bn_bias = bn_beta.astype(jnp.float32) - bn_mean.astype(jnp.float32) * bn_scale
    w1f = w1.astype(jnp.float32)                    # (mid, C)
    w2f = w2.astype(jnp.float32)                    # (C, mid)

    # --- generation-aware VMEM budgeting (v5e/v6e: 128 MiB, v7x: 64 MiB) -----
    vmem_cap = _vmem_capacity_bytes()
    slab_budget = min(vmem_cap - 24 * _MiB, 100 * _MiB)

    per_sample_raw = C * HW * in_b
    # double-buffered in + out blocks plus ~2 f32-sized in-kernel temporaries
    per_sample_need = C * HW * (4 * in_b + 8)
    weight_need = 4 * (2 * C * mid + 2 * mid) * 4   # double-buffered weights
    nb_fit = (slab_budget - weight_need) // max(per_sample_need, 1)
    fits_single_pass = (nb_fit >= 1) and not force_two_pass

    if fits_single_pass:
        nb_perf = max(1, -(-(2 * _MiB) // per_sample_raw))   # ceil: >=2MiB blocks
        nb = int(min(N, nb_fit, nb_perf))
        if N >= 2:
            # keep >=2 grid steps: v7x megacore sharding + pipeline overlap.
            nb = min(nb, -(-N // 2))
        nb = max(nb, 1)
        # TODO(synk): for batch-1 on v7x, split HW across the two TensorCores
        # (per-core partial pools combined outside); single grid step here.
        vmem_need = nb * per_sample_need + weight_need
        vmem_limit = max(32 * _MiB,
                         min(int(1.25 * vmem_need), vmem_cap - 16 * _MiB))
        out_flat = _se_single_pass(
            x_flat, w1f.T, bn_scale.reshape(1, mid), bn_bias.reshape(1, mid),
            w2f.T, inv_hw=inv_hw, nb=nb, vmem_limit=vmem_limit,
            donate_x=donate_x)
    else:
        vmem_limit = max(32 * _MiB, min(vmem_cap - 16 * _MiB, 64 * _MiB))
        out_flat = _se_two_pass(
            x_flat, w1f, bn_scale.reshape(mid, 1), bn_bias.reshape(mid, 1),
            w2f, inv_hw=inv_hw, vmem_limit=vmem_limit,
            tile_hw_override=_two_pass_tile_hw, donate_x=donate_x)

    return out_flat.reshape(N, C, H, W)


def _reference(x, w1, bn_gamma, bn_beta, bn_mean, bn_var, w2, eps=1e-5):
    xf = x.astype(jnp.float32)
    pooled = jnp.mean(xf, axis=(2, 3))                        # (N, C)
    h = pooled @ w1.T
    h = (h - bn_mean) / jnp.sqrt(bn_var + eps) * bn_gamma + bn_beta
    h = jnp.maximum(h, 0.0)
    atten = jnp.clip(h @ w2.T + 3.0, 0.0, 6.0) / 6.0
    return xf * atten[:, :, None, None]


if __name__ == "__main__":
    key = jax.random.PRNGKey(0)
    N, C, H, W = 2, 16, 16, 16       # inplanes=16 -> bottleneck mid = 4
    mid = C // 4

    k1, k2, k3, k4, k5, k6, k7, k8 = jax.random.split(key, 8)
    x = jax.random.normal(k1, (N, C, H, W), dtype=jnp.float32)
    w1 = jax.random.normal(k2, (mid, C), dtype=jnp.float32) * 0.1
    w2 = jax.random.normal(k3, (C, mid), dtype=jnp.float32) * 0.1
    bn_gamma = 1.0 + 0.1 * jax.random.normal(k4, (mid,), dtype=jnp.float32)
    bn_beta = 0.1 * jax.random.normal(k5, (mid,), dtype=jnp.float32)
    bn_mean = 0.05 * jax.random.normal(k6, (mid,), dtype=jnp.float32)
    bn_var = jnp.ones((mid,), dtype=jnp.float32)
    params = (w1, bn_gamma, bn_beta, bn_mean, bn_var, w2)

    # 1) Single-pass, HW multiple of 128.
    ref = _reference(x, *params)
    out = jax.block_until_ready(se_layer(x, *params))
    assert jnp.allclose(out, ref, atol=1e-4, rtol=1e-4), "single-pass mismatch"

    # 2) Single-pass, ragged spatial (7x7 = 49 lanes, full-extent block).
    xr = jax.random.normal(k7, (N, C, 7, 7), dtype=jnp.float32)
    refr = _reference(xr, *params)
    outr = jax.block_until_ready(se_layer(xr, *params))
    assert jnp.allclose(outr, refr, atol=1e-4, rtol=1e-4), "ragged mismatch"

    # 3) Two-pass path forced, with a forced 128-lane tile so the ragged last
    #    HW tile exercises the in-kernel iota mask (HW = 20*20 = 400).
    xt = jax.random.normal(k8, (N, C, 20, 20), dtype=jnp.float32)
    reft = _reference(xt, *params)
    outt = jax.block_until_ready(
        se_layer(xt, *params, force_two_pass=True, _two_pass_tile_hw=128))
    assert jnp.allclose(outt, reft, atol=1e-4, rtol=1e-4), "two-pass mismatch"

    # 4) Native bf16 I/O on the single-pass path.
    xb = x.astype(jnp.bfloat16)
    refb = _reference(xb, *params)
    outb = jax.block_until_ready(se_layer(xb, *params))
    assert outb.dtype == jnp.bfloat16
    assert jnp.allclose(outb.astype(jnp.float32), refb, atol=5e-2, rtol=5e-2), \
        "bf16 mismatch"

    print("KERNEL_OK")
</pallas_src>

<mosaic_0001>
module attributes {stable_mosaic.version = 11 : i64} {
  func.func @_se_single_pass_kernel(%arg0: i32, %arg1: memref<1x16x256xf32, #tpu.memory_space<vmem>>, %arg2: memref<16x4xf32, #tpu.memory_space<vmem>>, %arg3: memref<1x4xf32, #tpu.memory_space<vmem>>, %arg4: memref<1x4xf32, #tpu.memory_space<vmem>>, %arg5: memref<4x16xf32, #tpu.memory_space<vmem>>, %arg6: memref<1x16x256xf32, #tpu.memory_space<vmem>>) attributes {dimension_semantics = [#tpu.dimension_semantics<parallel>], iteration_bounds = array<i64: 2>, scalar_prefetch = 0 : i64, scratch_operands = 0 : i64, tpu.core_type = #tpu.core_type<tc>, window_params = [{transform_indices = @transform_0, window_bounds = array<i64: 1, 16, 256>}, {pipeline_mode = #tpu.pipeline_mode<synchronous>, transform_indices = @transform_1, window_bounds = array<i64: 16, 4>}, {pipeline_mode = #tpu.pipeline_mode<synchronous>, transform_indices = @transform_2, window_bounds = array<i64: 1, 4>}, {pipeline_mode = #tpu.pipeline_mode<synchronous>, transform_indices = @transform_3, window_bounds = array<i64: 1, 4>}, {pipeline_mode = #tpu.pipeline_mode<synchronous>, transform_indices = @transform_4, window_bounds = array<i64: 4, 16>}, {transform_indices = @transform_5, window_bounds = array<i64: 1, 16, 256>}]} {
    %c0 = arith.constant 0 : index
    %c0_0 = arith.constant 0 : index
    %c0_1 = arith.constant 0 : index
    %0 = vector.load %arg1[%c0, %c0_0, %c0_1] : memref<1x16x256xf32, #tpu.memory_space<vmem>>, vector<1x16x256xf32>
    %cst = arith.constant dense<0.000000e+00> : vector<1x16xf32>
    %1 = vector.multi_reduction <add>, %0, %cst [2] : vector<1x16x256xf32> to vector<1x16xf32>
    %cst_2 = arith.constant 3.906250e-03 : f32
    %2 = vector.broadcast %cst_2 : f32 to vector<1x16xf32>
    %3 = arith.mulf %1, %2 : vector<1x16xf32>
    %c0_3 = arith.constant 0 : index
    %c0_4 = arith.constant 0 : index
    %4 = vector.load %arg2[%c0_3, %c0_4] : memref<16x4xf32, #tpu.memory_space<vmem>>, vector<16x4xf32>
    %cst_5 = arith.constant dense<0.000000e+00> : vector<1x4xf32>
    %5 = tpu.matmul %3, %4, %cst_5 {dimension_numbers = #tpu.dot_dimension_numbers<[1], [0], [0], [1], [0, 0, 1, 1], [], []>} : vector<1x16xf32>, vector<16x4xf32>, vector<1x4xf32> -> vector<1x4xf32>
    %c0_6 = arith.constant 0 : index
    %c0_7 = arith.constant 0 : index
    %6 = vector.load %arg3[%c0_6, %c0_7] : memref<1x4xf32, #tpu.memory_space<vmem>>, vector<1x4xf32>
    %7 = arith.mulf %5, %6 : vector<1x4xf32>
    %c0_8 = arith.constant 0 : index
    %c0_9 = arith.constant 0 : index
    %8 = vector.load %arg4[%c0_8, %c0_9] : memref<1x4xf32, #tpu.memory_space<vmem>>, vector<1x4xf32>
    %9 = arith.addf %7, %8 : vector<1x4xf32>
    %cst_10 = arith.constant 0.000000e+00 : f32
    %10 = vector.broadcast %cst_10 : f32 to vector<1x4xf32>
    %11 = arith.maximumf %9, %10 : vector<1x4xf32>
    %c0_11 = arith.constant 0 : index
    %c0_12 = arith.constant 0 : index
    %12 = vector.load %arg5[%c0_11, %c0_12] : memref<4x16xf32, #tpu.memory_space<vmem>>, vector<4x16xf32>
    %cst_13 = arith.constant dense<0.000000e+00> : vector<1x16xf32>
    %13 = tpu.matmul %11, %12, %cst_13 {dimension_numbers = #tpu.dot_dimension_numbers<[1], [0], [0], [1], [0, 0, 1, 1], [], []>} : vector<1x4xf32>, vector<4x16xf32>, vector<1x16xf32> -> vector<1x16xf32>
    %cst_14 = arith.constant 3.000000e+00 : f32
    %14 = vector.broadcast %cst_14 : f32 to vector<1x16xf32>
    %15 = arith.addf %13, %14 : vector<1x16xf32>
    %cst_15 = arith.constant 0.000000e+00 : f32
    %cst_16 = arith.constant 6.000000e+00 : f32
    %16 = vector.broadcast %cst_15 : f32 to vector<1x16xf32>
    %17 = arith.maximumf %16, %15 : vector<1x16xf32>
    %18 = vector.broadcast %cst_16 : f32 to vector<1x16xf32>
    %19 = arith.minimumf %18, %17 : vector<1x16xf32>
    %cst_17 = arith.constant 0.166666672 : f32
    %20 = vector.broadcast %cst_17 : f32 to vector<1x16xf32>
    %21 = arith.mulf %19, %20 : vector<1x16xf32>
    %c0_18 = arith.constant 0 : index
    %c0_19 = arith.constant 0 : index
    %c0_20 = arith.constant 0 : index
    %22 = vector.load %arg1[%c0_18, %c0_19, %c0_20] : memref<1x16x256xf32, #tpu.memory_space<vmem>>, vector<1x16x256xf32>
    %23 = vector.shape_cast %21 : vector<1x16xf32> to vector<1x16x1xf32>
    %24 = vector.broadcast %23 : vector<1x16x1xf32> to vector<1x16x256xf32>
    %25 = arith.mulf %22, %24 : vector<1x16x256xf32>
    %c0_21 = arith.constant 0 : index
    %c0_22 = arith.constant 0 : index
    %c0_23 = arith.constant 0 : index
    %26 = vector.load %arg6[%c0_21, %c0_22, %c0_23] : memref<1x16x256xf32, #tpu.memory_space<vmem>>, vector<1x16x256xf32>
    tpu.vector_store %arg6[%c0_21, %c0_22, %c0_23], %25 {strides = array<i32>} : memref<1x16x256xf32, #tpu.memory_space<vmem>>, vector<1x16x256xf32>,
    return
  }
  func.func @transform_0(%arg0: i32) -> (i32, i32, i32) {
    %c0_i32 = arith.constant 0 : i32
    %c0_i32_0 = arith.constant 0 : i32
    %c0_i32_1 = arith.constant 0 : i32
    return %arg0, %c0_i32, %c0_i32_0 : i32, i32, i32
  }
  func.func @transform_1(%arg0: i32) -> (i32, i32) {
    %c0_i32 = arith.constant 0 : i32
    %c0_i32_0 = arith.constant 0 : i32
    %c0_i32_1 = arith.constant 0 : i32
    return %c0_i32, %c0_i32_0 : i32, i32
  }
  func.func @transform_2(%arg0: i32) -> (i32, i32) {
    %c0_i32 = arith.constant 0 : i32
    %c0_i32_0 = arith.constant 0 : i32
    %c0_i32_1 = arith.constant 0 : i32
    return %c0_i32, %c0_i32_0 : i32, i32
  }
  func.func @transform_3(%arg0: i32) -> (i32, i32) {
    %c0_i32 = arith.constant 0 : i32
    %c0_i32_0 = arith.constant 0 : i32
    %c0_i32_1 = arith.constant 0 : i32
    return %c0_i32, %c0_i32_0 : i32, i32
  }
  func.func @transform_4(%arg0: i32) -> (i32, i32) {
    %c0_i32 = arith.constant 0 : i32
    %c0_i32_0 = arith.constant 0 : i32
    %c0_i32_1 = arith.constant 0 : i32
    return %c0_i32, %c0_i32_0 : i32, i32
  }
  func.func @transform_5(%arg0: i32) -> (i32, i32, i32) {
    %c0_i32 = arith.constant 0 : i32
    %c0_i32_0 = arith.constant 0 : i32
    %c0_i32_1 = arith.constant 0 : i32
    return %arg0, %c0_i32, %c0_i32_0 : i32, i32, i32
  }
}

</mosaic_0001>

<llo_original>
// kernel: tpu_custom_call.1
$region0: #{tpu_custom_call.1}
  #allocation0 [shape = 'u32[]', space=smem, size = 0x4, offset = 0x4, fixed_abs, tag = 'smem constant byte address 0x4 - core index']
  #allocation1 [shape = 'u32[144,128]{1,0:T(1,128)}', space=vmem, size = 0x12000, scoped, tag = 'internal scratch']
  %s0 = inlined_call_operand.hbm [shape: f32[2,16,256], index: 0, kind: input, shape index: {}]
  %s1 = inlined_call_operand.vmem [shape: f32[16,4], index: 1, kind: input, shape index: {}]
  %s2 = inlined_call_operand.vmem [shape: f32[1,4], index: 2, kind: input, shape index: {}]
  %s3 = inlined_call_operand.vmem [shape: f32[1,4], index: 3, kind: input, shape index: {}]
  %s4 = inlined_call_operand.vmem [shape: f32[4,16], index: 4, kind: input, shape index: {}]
  %s5 = inlined_call_operand.hbm [shape: f32[2,16,256], index: 5, kind: output, shape index: {}]
  %s6 = sld [smem:[#allocation0]]
  $region57: #{tpu_custom_call.1} parent=0
    _
  %s8 = ssub.s32 1, %s6
  %s9 = scalar_select 0, %s8, %s6
  $region1: #{tpu_custom_call.1} parent=0
    #allocation2 [shape = 'u8[32768]{0}', space=vmem, size = 0x8000, scoped, tag = 'input window, operand 0']
    #allocation3 [shape = 's32[2]{0}', space=sflag, size = 0x8, scoped, tag = 'scoped memory for tpu_custom_call.1']
    #allocation4 [shape = 's32[2]{0}', space=sflag, size = 0x8, scoped, tag = 'scoped memory for tpu_custom_call.1']
    #allocation5 [shape = 'u8[32768]{0}', space=vmem, size = 0x8000, scoped, tag = 'output window, operand 0']
    %10 = vsyncpa [#allocation3], 0
    %s11 = scalar_lea.sflag [#allocation3], 1
    %12 = vsyncpa %s11, 0
    %13 = vsyncpa [#allocation4], 0
    %s14 = scalar_lea.sflag [#allocation4], 1
    %15 = vsyncpa %s14, 0
    loop: start=0, step=1, limit=4
    $region2: #{tpu_custom_call.1} parent=1 // loop_pre_header
      _
    $region3: #{tpu_custom_call.1} parent=1 // loop_header
      %s17 = sphi 0, %s21
      %p18 = scmp.ge.s32.totalorder %s17, 4
      %s27 = sphi 0, %s29
      %s30 = sphi 0, %s27
      %s31 = sphi 0, %s30
      %s47 = sphi 0, %s31
      %s51 = sphi 0, %s51
      %s53 = sphi 0, %s51
      %s54 = sphi 0, %s53
      %s68 = sphi 0, %s54
      %s72 = sphi 0, %s72
      %s74 = sphi 0, %s72
      %s75 = sphi 0, %s74
      %s89 = sphi 0, %s75
      %s93 = sphi 0, %s93
      %s95 = sphi 0, %s93
      %s96 = sphi 0, %s95
      %s110 = sphi 0, %s96
      %s114 = sphi 0, %s114
      %s116 = sphi 0, %s114
      %s117 = sphi 0, %s116
      %s131 = sphi 0, %s117
      %s137 = sphi 0, %s139
      %s140 = sphi 0, %s137
      %s141 = sphi 0, %s140
      %s157 = sphi 0, %s141
    $region4: #{tpu_custom_call.1} parent=1 // loop_header_branch
      %20 = sbr.rel (%p18) target = $region8
    $region5: #{tpu_custom_call.1} parent=1 // loop_body
      %s22 = ssub.s32 %s17, 1
      %s23 = ssub.s32 %s17, 2
      %s24 = sadd.s32 %s17, 1
      %s25 = ssub.s32 %s17, %s24
      %p26 = scmp.eq.s32.totalorder %s25, 0
      %s28 = sadd.s32 %s27, 1
      %s29 = scalar_select %p26, %s27, %s28
      %p32 = pneg %p26
      %p33 = scmp.eq.s32.totalorder %s17, 1
      %p34 = por %p32, %p33
      %p35 = scmp.ne.s32.totalorder %s27, %s30
      %p36 = scmp.eq.s32.totalorder %s17, 0
      %p37 = por %p35, %p36
      %p38 = scmp.ne.s32.totalorder %s27, %s30
      %p39 = scmp.eq.s32.totalorder %s22, 1
      %p40 = por %p38, %p39
      %p41 = scmp.ne.s32.totalorder %s30, %s31
      %p42 = scmp.eq.s32.totalorder %s22, 0
      %p43 = por %p41, %p42
      %p44 = scmp.ne.s32.totalorder %s30, %s31
      %p45 = scmp.eq.s32.totalorder %s23, 1
      %p46 = por %p44, %p45
      %p48 = scmp.ne.s32.totalorder %s31, %s47
      %p49 = scmp.eq.s32.totalorder %s23, 0
      %p50 = por %p48, %p49
      %s52 = sadd.s32 %s51, 1
      %p55 = scmp.eq.s32.totalorder %s17, 1
      %p56 = scmp.ne.s32.totalorder %s51, %s53
      %p57 = scmp.eq.s32.totalorder %s17, 0
      %p58 = por %p56, %p57
      %p59 = scmp.ne.s32.totalorder %s51, %s53
      %p60 = scmp.eq.s32.totalorder %s22, 1
      %p61 = por %p59, %p60
      %p62 = scmp.ne.s32.totalorder %s53, %s54
      %p63 = scmp.eq.s32.totalorder %s22, 0
      %p64 = por %p62, %p63
      %p65 = scmp.ne.s32.totalorder %s53, %s54
      %p66 = scmp.eq.s32.totalorder %s23, 1
      %p67 = por %p65, %p66
      %p69 = scmp.ne.s32.totalorder %s54, %s68
      %p70 = scmp.eq.s32.totalorder %s23, 0
      %p71 = por %p69, %p70
      %s73 = sadd.s32 %s72, 1
      %p76 = scmp.eq.s32.totalorder %s17, 1
      %p77 = scmp.ne.s32.totalorder %s72, %s74
      %p78 = scmp.eq.s32.totalorder %s17, 0
      %p79 = por %p77, %p78
      %p80 = scmp.ne.s32.totalorder %s72, %s74
      %p81 = scmp.eq.s32.totalorder %s22, 1
      %p82 = por %p80, %p81
      %p83 = scmp.ne.s32.totalorder %s74, %s75
      %p84 = scmp.eq.s32.totalorder %s22, 0
      %p85 = por %p83, %p84
      %p86 = scmp.ne.s32.totalorder %s74, %s75
      %p87 = scmp.eq.s32.totalorder %s23, 1
      %p88 = por %p86, %p87
      %p90 = scmp.ne.s32.totalorder %s75, %s89
      %p91 = scmp.eq.s32.totalorder %s23, 0
      %p92 = por %p90, %p91
      %s94 = sadd.s32 %s93, 1
      %p97 = scmp.eq.s32.totalorder %s17, 1
      %p98 = scmp.ne.s32.totalorder %s93, %s95
      %p99 = scmp.eq.s32.totalorder %s17, 0
      %p100 = por %p98, %p99
      %p101 = scmp.ne.s32.totalorder %s93, %s95
      %p102 = scmp.eq.s32.totalorder %s22, 1
      %p103 = por %p101, %p102
      %p104 = scmp.ne.s32.totalorder %s95, %s96
      %p105 = scmp.eq.s32.totalorder %s22, 0
      %p106 = por %p104, %p105
      %p107 = scmp.ne.s32.totalorder %s95, %s96
      %p108 = scmp.eq.s32.totalorder %s23, 1
      %p109 = por %p107, %p108
      %p111 = scmp.ne.s32.totalorder %s96, %s110
      %p112 = scmp.eq.s32.totalorder %s23, 0
      %p113 = por %p111, %p112
      %s115 = sadd.s32 %s114, 1
      %p118 = scmp.eq.s32.totalorder %s17, 1
      %p119 = scmp.ne.s32.totalorder %s114, %s116
      %p120 = scmp.eq.s32.totalorder %s17, 0
      %p121 = por %p119, %p120
      %p122 = scmp.ne.s32.totalorder %s114, %s116
      %p123 = scmp.eq.s32.totalorder %s22, 1
      %p124 = por %p122, %p123
      %p125 = scmp.ne.s32.totalorder %s116, %s117
      %p126 = scmp.eq.s32.totalorder %s22, 0
      %p127 = por %p125, %p126
      %p128 = scmp.ne.s32.totalorder %s116, %s117
      %p129 = scmp.eq.s32.totalorder %s23, 1
      %p130 = por %p128, %p129
      %p132 = scmp.ne.s32.totalorder %s117, %s131
      %p133 = scmp.eq.s32.totalorder %s23, 0
      %p134 = por %p132, %p133
      %s135 = ssub.s32 %s17, %s24
      %p136 = scmp.eq.s32.totalorder %s135, 0
      %s138 = sadd.s32 %s137, 1
      %s139 = scalar_select %p136, %s137, %s138
      %p142 = pneg %p136
      %p143 = scmp.eq.s32.totalorder %s17, 1
      %p144 = por %p142, %p143
      %p145 = scmp.ne.s32.totalorder %s137, %s140
      %p146 = scmp.eq.s32.totalorder %s17, 0
      %p147 = por %p145, %p146
      %p148 = scmp.ne.s32.totalorder %s137, %s140
      %p149 = scmp.eq.s32.totalorder %s22, 1
      %p150 = por %p148, %p149
      %p151 = scmp.ne.s32.totalorder %s140, %s141
      %p152 = scmp.eq.s32.totalorder %s22, 0
      %p153 = por %p151, %p152
      %p154 = scmp.ne.s32.totalorder %s140, %s141
      %p155 = scmp.eq.s32.totalorder %s23, 1
      %p156 = por %p154, %p155
      %p158 = scmp.ne.s32.totalorder %s141, %s157
      %p159 = scmp.eq.s32.totalorder %s23, 0
      %p160 = por %p158, %p159
      %p161 = scmp.le.s32.totalorder 1, %s17
      %p162 = scmp.lt.s32.totalorder %s17, 3
      %p163 = pnand %p161, %p162
      %p164 = pneg %p163
      // Predicated region
      $region9: #{tpu_custom_call.1} parent=5 // pred_check
        _
      $region10: #{tpu_custom_call.1} parent=5 // pred_check_branch
        %166 = sbr.rel (%p163) target = $region12
      $region11: #{tpu_custom_call.1} parent=5 // pred_region
        %s167 = ssub.s32 %s17, 1
        // Predicated region
        $region13: #{tpu_custom_call.1} parent=11 // pred_check
          %p168 = pneg %p64
        $region14: #{tpu_custom_call.1} parent=11 // pred_check_branch
          %170 = sbr.rel (%p168) target = $region16
        $region15: #{tpu_custom_call.1} parent=11 // pred_region
          _
        $region16: #{tpu_custom_call.1} parent=11 // pred_fallthru
          _
        // Predicated region
        $region17: #{tpu_custom_call.1} parent=11 // pred_check
          %p171 = pneg %p85
        $region18: #{tpu_custom_call.1} parent=11 // pred_check_branch
          %173 = sbr.rel (%p171) target = $region20
        $region19: #{tpu_custom_call.1} parent=11 // pred_region
          _
        $region20: #{tpu_custom_call.1} parent=11 // pred_fallthru
          _
        // Predicated region
        $region21: #{tpu_custom_call.1} parent=11 // pred_check
          %p174 = pneg %p106
        $region22: #{tpu_custom_call.1} parent=11 // pred_check_branch
          %176 = sbr.rel (%p174) target = $region24
        $region23: #{tpu_custom_call.1} parent=11 // pred_region
          _
        $region24: #{tpu_custom_call.1} parent=11 // pred_fallthru
          _
        // Predicated region
        $region25: #{tpu_custom_call.1} parent=11 // pred_check
          %p177 = pneg %p127
        $region26: #{tpu_custom_call.1} parent=11 // pred_check_branch
          %179 = sbr.rel (%p177) target = $region28
        $region27: #{tpu_custom_call.1} parent=11 // pred_region
          _
        $region28: #{tpu_custom_call.1} parent=11 // pred_fallthru
          _
      $region12: #{tpu_custom_call.1} parent=5 // pred_fallthru
        _
      %p180 = scmp.lt.s32.totalorder %s17, 2
      // Predicated region
      $region29: #{tpu_custom_call.1} parent=5 // pred_check
        %p181 = pneg %p180
      $region30: #{tpu_custom_call.1} parent=5 // pred_check_branch
        %183 = sbr.rel (%p181) target = $region32
      $region31: #{tpu_custom_call.1} parent=5 // pred_region
        // Predicated region
        $region33: #{tpu_custom_call.1} parent=31 // pred_check
          %p184 = pneg %p37
        $region34: #{tpu_custom_call.1} parent=31 // pred_check_branch
          %186 = sbr.rel (%p184) target = $region36
        $region35: #{tpu_custom_call.1} parent=31 // pred_region
          %s187 = sand.u32 %s27, 1
          %s188 = scalar_lea.sflag [#allocation3], %s187
          %s189 = sand.u32 %s27, 1
          %s190 = smul.addr %s189, 32
          %s191 = scalar_lea.vmem [#allocation2], %s190
          %s193 = ssub.s32 512, 512
          %194 = vsyncadd %s188, %s193
          %s195 = smul.addr %s17, 4
          %s196 = smul.addr %s195, 128
          %s197 = scalar_lea.hbm %s0, %s196
          %s198 = sshll.u32 %s191, 4
          %s199 = int_to_ptr.vmem [resolvable:$true] %s198
          %204 = dma.hbm_to_vmem [thread:$0]  %s197, 512, %s199, %s188, 256, 256, 16
        $region36: #{tpu_custom_call.1} parent=31 // pred_fallthru
          _
      $region32: #{tpu_custom_call.1} parent=5 // pred_fallthru
        _
      %p205 = scmp.le.s32.totalorder 1, %s17
      %p206 = scmp.lt.s32.totalorder %s17, 3
      %p207 = pnand %p205, %p206
      %p208 = pneg %p207
      // Predicated region
      $region37: #{tpu_custom_call.1} parent=5 // pred_check
        _
      $region38: #{tpu_custom_call.1} parent=5 // pred_check_branch
        %210 = sbr.rel (%p207) target = $region40
      $region39: #{tpu_custom_call.1} parent=5 // pred_region
        %s211 = ssub.s32 %s17, 1
        %s212 = sand.u32 %s30, 1
        %s213 = scalar_lea.sflag [#allocation3], %s212
        %s214 = sand.u32 %s30, 1
        %s215 = smul.addr %s214, 32
        %s216 = scalar_lea.vmem [#allocation2], %s215
        // Predicated region
        $region41: #{tpu_custom_call.1} parent=39 // pred_check
          %p217 = pneg %p43
        $region42: #{tpu_custom_call.1} parent=39 // pred_check_branch
          %219 = sbr.rel (%p217) target = $region44
        $region43: #{tpu_custom_call.1} parent=39 // pred_region
          %220 = dma.done %s213, 512
        $region44: #{tpu_custom_call.1} parent=39 // pred_fallthru
          _
        %s221 = sand.u32 %s30, 1
        %s222 = scalar_lea.sflag [#allocation3], %s221
        %s223 = sand.u32 %s30, 1
        %s224 = smul.addr %s223, 32
        %s225 = scalar_lea.vmem [#allocation2], %s224
        %p226 = pneg %p43
        %p227 = pneg %p40
        %p228 = pneg %p64
        %p229 = pneg %p61
        %p230 = pneg %p85
        %p231 = pneg %p82
        %p232 = pneg %p106
        %p233 = pneg %p103
        %p234 = pneg %p127
        %p235 = pneg %p124
        %p236 = pneg %p153
        %p237 = pneg %p150
        %s238 = sand.u32 %s140, 1
        %s239 = scalar_lea.sflag [#allocation4], %s238
        %s240 = sand.u32 %s140, 1
        %s241 = smul.addr %s240, 32
        %s242 = scalar_lea.vmem [#allocation5], %s241
        %v243 = vld [vmem:[%s216] sm:$0xff]
        %v244 = vld [vmem:[%s216 + $0x8] sm:$0xff]
        %v245 = vld [vmem:[%s216 + $0x10] sm:$0xff]
        %v246 = vld [vmem:[%s216 + $0x18] sm:$0xff]
        %v247 = vadd.f32 %v243, %v244
        %248 = vadd.xlane.f32.xlu0 %v247
        %v249 = vpop.xlane.xlu0 %248
        %v250 = vadd.f32 %v245, %v246
        %251 = vadd.xlane.f32.xlu0 %v250
        %v252 = vpop.xlane.xlu0 %251
        %v253 = vmul.f32 %v249, 0.00390625
        %v254 = vmul.f32 %v252, 0.00390625
        %v255 = vld [vmem:[%s1] sm:$0xff]
        %v256 = vld [vmem:[%s1 + $0x8] sm:$0xff]
        %v259 = vlaneseq
        %v260 = vand.u32 %v259, 127
        %v261 = vlaneseq
        %v262 = vshrl.u32 %v261, 7
        %v263 = vsub.s32 %v260, %v262
        %v264 = vrot.slane %v253, %v263
        %v265 = vadd.s32 %v260, 4294967288
        %v266 = vlaneseq
        %v267 = vshrl.u32 %v266, 7
        %v268 = vsub.s32 %v265, %v267
        %v269 = vrot.slane %v254, %v268
        %vm270 = vcmask 130112
        %v271 = vsel %vm270, %v269, %v264
        %vm272 = vcmask 130048
        %v273 = vsel %vm272, %v271, 0
        %275 = vmatprep.subr.mxu0 0.0
        %276 = vmatpush1.msra.mxu0 0.0
        %277 = vmatprep.subr.mxu0 0.0
        %278 = vmatpush1.msra.mxu0 0.0
        %279 = vmatprep.subr.mxu0 0.0
        %280 = vmatpush1.msra.mxu0 0.0
        %281 = vmatprep.subr.mxu0 0.0
        %282 = vmatpush1.msra.mxu0 0.0
        %283 = vmatprep.subr.mxu0 0.0
        %284 = vmatpush1.msra.mxu0 0.0
        %285 = vmatprep.subr.mxu0 0.0
        %286 = vmatpush1.msra.mxu0 0.0
        %287 = vmatprep.subr.mxu0 0.0
        %288 = vmatpush1.msra.mxu0 0.0
        %289 = vmatprep.subr.mxu0 0.0
        %290 = vmatpush1.msra.mxu0 0.0
        %291 = vmatprep.subr.mxu0 0.0
        %292 = vmatpush1.msra.mxu0 0.0
        %293 = vmatprep.subr.mxu0 0.0
        %294 = vmatpush1.msra.mxu0 0.0
        %295 = vmatprep.subr.mxu0 0.0
        %296 = vmatpush1.msra.mxu0 0.0
        %297 = vmatprep.subr.mxu0 0.0
        %298 = vmatpush1.msra.mxu0 0.0
        %299 = vmatprep.subr.mxu0 0.0
        %300 = vmatpush1.msra.mxu0 0.0
        %301 = vmatprep.subr.mxu0 0.0
        %302 = vmatpush1.msra.mxu0 0.0
        %303 = vmatprep.subr.mxu0 0.0
        %304 = vmatpush1.msra.mxu0 %v256
        %305 = vmatprep.subr.mxu0 0.0
        %306 = vmatpush1.msra.mxu0 %v255
        %307 = vmatprep.subr.mxu0 0.0
        %308 = vmatpush2.msra.mxu0 0.0
        %309 = vmatprep.subr.mxu0 0.0
        %310 = vmatpush2.msra.mxu0 0.0
        %311 = vmatprep.subr.mxu0 0.0
        %312 = vmatpush2.msra.mxu0 0.0
        %313 = vmatprep.subr.mxu0 0.0
        %314 = vmatpush2.msra.mxu0 0.0
        %315 = vmatprep.subr.mxu0 0.0
        %316 = vmatpush2.msra.mxu0 0.0
        %317 = vmatprep.subr.mxu0 0.0
        %318 = vmatpush2.msra.mxu0 0.0
        %319 = vmatprep.subr.mxu0 0.0
        %320 = vmatpush2.msra.mxu0 0.0
        %321 = vmatprep.subr.mxu0 0.0
        %322 = vmatpush2.msra.mxu0 0.0
        %323 = vmatprep.subr.mxu0 0.0
        %324 = vmatpush2.msra.mxu0 0.0
        %325 = vmatprep.subr.mxu0 0.0
        %326 = vmatpush2.msra.mxu0 0.0
        %327 = vmatprep.subr.mxu0 0.0
        %328 = vmatpush2.msra.mxu0 0.0
        %329 = vmatprep.subr.mxu0 0.0
        %330 = vmatpush2.msra.mxu0 0.0
        %331 = vmatprep.subr.mxu0 0.0
        %332 = vmatpush2.msra.mxu0 0.0
        %333 = vmatprep.subr.mxu0 0.0
        %334 = vmatpush2.msra.mxu0 0.0
        %335 = vmatprep.subr.mxu0 0.0
        %336 = vmatpush2.msra.mxu0 0.0
        %337 = vmatprep.subr.mxu0 0.0
        %338 = vmatpush2.msra.mxu0 0.0
        %339 = vmatprep.mubr.f32.mxu0 0.0
        %340 = vmatmul.mubr.f32.gmra.mxu0 %v273
        %v341 = vpop.f32.mrf.mxu0
        %v342 = vadd.f32 0.0, %v341
        %v343 = vpop.f32.mrf.mxu0
        %344 = vdwg.mxu0
        %v345 = vld [vmem:[%s2] sm:$0x1]
        %v346 = vmul.f32 %v342, %v345
        %v347 = vld [vmem:[%s3] sm:$0x1]
        %v348 = vadd.f32 %v346, %v347
        %v349 = vmax.f32 %v348, 0.0
        %v350 = vld [vmem:[%s4] sm:$0xf]
        %vm351 = vcmask 31744
        %v353 = vsel %vm351, %v349, 0
        %vm355 = vcmask 1043456
        %v357 = vsel %vm355, %v350, 0
        %359 = vmatprep.subr.mxu0 0.0
        %360 = vmatpush1.msra.mxu0 0.0
        %361 = vmatprep.subr.mxu0 0.0
        %362 = vmatpush1.msra.mxu0 0.0
        %363 = vmatprep.subr.mxu0 0.0
        %364 = vmatpush1.msra.mxu0 0.0
        %365 = vmatprep.subr.mxu0 0.0
        %366 = vmatpush1.msra.mxu0 0.0
        %367 = vmatprep.subr.mxu0 0.0
        %368 = vmatpush1.msra.mxu0 0.0
        %369 = vmatprep.subr.mxu0 0.0
        %370 = vmatpush1.msra.mxu0 0.0
        %371 = vmatprep.subr.mxu0 0.0
        %372 = vmatpush1.msra.mxu0 0.0
        %373 = vmatprep.subr.mxu0 0.0
        %374 = vmatpush1.msra.mxu0 0.0
        %375 = vmatprep.subr.mxu0 0.0
        %376 = vmatpush1.msra.mxu0 0.0
        %377 = vmatprep.subr.mxu0 0.0
        %378 = vmatpush1.msra.mxu0 0.0
        %379 = vmatprep.subr.mxu0 0.0
        %380 = vmatpush1.msra.mxu0 0.0
        %381 = vmatprep.subr.mxu0 0.0
        %382 = vmatpush1.msra.mxu0 0.0
        %383 = vmatprep.subr.mxu0 0.0
        %384 = vmatpush1.msra.mxu0 0.0
        %385 = vmatprep.subr.mxu0 0.0
        %386 = vmatpush1.msra.mxu0 0.0
        %387 = vmatprep.subr.mxu0 0.0
        %388 = vmatpush1.msra.mxu0 0.0
        %389 = vmatprep.subr.mxu0 0.0
        %390 = vmatpush1.msra.mxu0 %v357
        %391 = vmatprep.subr.mxu0 0.0
        %392 = vmatpush2.msra.mxu0 0.0
        %393 = vmatprep.subr.mxu0 0.0
        %394 = vmatpush2.msra.mxu0 0.0
        %395 = vmatprep.subr.mxu0 0.0
        %396 = vmatpush2.msra.mxu0 0.0
        %397 = vmatprep.subr.mxu0 0.0
        %398 = vmatpush2.msra.mxu0 0.0
        %399 = vmatprep.subr.mxu0 0.0
        %400 = vmatpush2.msra.mxu0 0.0
        %401 = vmatprep.subr.mxu0 0.0
        %402 = vmatpush2.msra.mxu0 0.0
        %403 = vmatprep.subr.mxu0 0.0
        %404 = vmatpush2.msra.mxu0 0.0
        %405 = vmatprep.subr.mxu0 0.0
        %406 = vmatpush2.msra.mxu0 0.0
        %407 = vmatprep.subr.mxu0 0.0
        %408 = vmatpush2.msra.mxu0 0.0
        %409 = vmatprep.subr.mxu0 0.0
        %410 = vmatpush2.msra.mxu0 0.0
        %411 = vmatprep.subr.mxu0 0.0
        %412 = vmatpush2.msra.mxu0 0.0
        %413 = vmatprep.subr.mxu0 0.0
        %414 = vmatpush2.msra.mxu0 0.0
        %415 = vmatprep.subr.mxu0 0.0
        %416 = vmatpush2.msra.mxu0 0.0
        %417 = vmatprep.subr.mxu0 0.0
        %418 = vmatpush2.msra.mxu0 0.0
        %419 = vmatprep.subr.mxu0 0.0
        %420 = vmatpush2.msra.mxu0 0.0
        %421 = vmatprep.subr.mxu0 0.0
        %422 = vmatpush2.msra.mxu0 0.0
        %423 = vmatprep.mubr.f32.mxu0 0.0
        %424 = vmatmul.mubr.f32.gmra.mxu0 %v353
        %v425 = vpop.f32.mrf.mxu0
        %v426 = vadd.f32 3.0, %v425
        %v427 = vpop.f32.mrf.mxu0
        %428 = vdwg.mxu0
        %v429 = vmax.f32 %v426, 0.0
        %v430 = vmin.f32 %v429, 6.0
        %v431 = vmul.f32 %v430, 0.16666667
        %v432 = vlaneseq
        %v433 = vshrl.u32 %v432, 7
        %v434 = vsub.s32 0, %v433
        %v435 = vrot.slane %v431, %v434
        %437 = vbcast.lane.b32.xlu0 %v435, 256
        %v438 = vpop.permute.xlu0 %437
        %s440 = sor.u32 256, 8
        %441 = vbcast.lane.b32.xlu0 %v435, %s440
        %v442 = vpop.permute.xlu0 %441
        %v443 = vmul.f32 %v243, %v438
        %v444 = vmul.f32 %v244, %v438
        %v445 = vmul.f32 %v245, %v442
        %v446 = vmul.f32 %v246, %v442
        %447 = vst [vmem:[%s242] sm:$0xff] %v443
        %448 = vst [vmem:[%s242 + $0x8] sm:$0xff] %v444
        %449 = vst [vmem:[%s242 + $0x10] sm:$0xff] %v445
        %450 = vst [vmem:[%s242 + $0x18] sm:$0xff] %v446
        %s451 = sand.u32 %s140, 1
        %s452 = scalar_lea.sflag [#allocation4], %s451
        %s453 = sand.u32 %s140, 1
        %s454 = smul.addr %s453, 32
        %s455 = scalar_lea.vmem [#allocation5], %s454
        // Predicated region
        $region45: #{tpu_custom_call.1} parent=39 // pred_check
          %p456 = pneg %p150
        $region46: #{tpu_custom_call.1} parent=39 // pred_check_branch
          %458 = sbr.rel (%p456) target = $region48
        $region47: #{tpu_custom_call.1} parent=39 // pred_region
          %s460 = ssub.s32 512, 512
          %461 = vsyncadd %s452, %s460
          %s462 = smul.addr %s22, 4
          %s463 = smul.addr %s462, 128
          %s464 = scalar_lea.hbm %s5, %s463
          %s465 = sshll.u32 %s455, 4
          %s466 = int_to_ptr.vmem [resolvable:$true] %s465
          %471 = dma.vmem_to_hbm [thread:$0]  %s466, 512, %s464, %s452, 256, 256, 16
        $region48: #{tpu_custom_call.1} parent=39 // pred_fallthru
          _
      $region40: #{tpu_custom_call.1} parent=5 // pred_fallthru
        _
      %p472 = scmp.le.s32.totalorder 2, %s17
      // Predicated region
      $region49: #{tpu_custom_call.1} parent=5 // pred_check
        %p473 = pneg %p472
      $region50: #{tpu_custom_call.1} parent=5 // pred_check_branch
        %475 = sbr.rel (%p473) target = $region52
      $region51: #{tpu_custom_call.1} parent=5 // pred_region
        %s476 = ssub.s32 %s17, 2
        // Predicated region
        $region53: #{tpu_custom_call.1} parent=51 // pred_check
          %p477 = pneg %p156
        $region54: #{tpu_custom_call.1} parent=51 // pred_check_branch
          %479 = sbr.rel (%p477) target = $region56
        $region55: #{tpu_custom_call.1} parent=51 // pred_region
          %s480 = sand.u32 %s141, 1
          %s481 = scalar_lea.sflag [#allocation4], %s480
          %s482 = sand.u32 %s141, 1
          %s483 = smul.addr %s482, 32
          %s484 = scalar_lea.vmem [#allocation5], %s483
          %485 = dma.done %s481, 512
        $region56: #{tpu_custom_call.1} parent=51 // pred_fallthru
          _
      $region52: #{tpu_custom_call.1} parent=5 // pred_fallthru
        _
    $region6: #{tpu_custom_call.1} parent=1 // loop_footer
      %s21 = sadd.s32 1, %s17
    $region7: #{tpu_custom_call.1} parent=1 // loop_footer_branch
      %16 = sbr.rel target = $region3
    $region8: #{tpu_custom_call.1} parent=1 // loop_exit
      _
    %486 = vsyncpa [#allocation3], 1
    %s487 = scalar_lea.sflag [#allocation3], 1
    %488 = vsyncpa %s487, 1
    %489 = vsyncpa [#allocation4], 1
    %s490 = scalar_lea.sflag [#allocation4], 1
    %491 = vsyncpa %s490, 1

</llo_original>
